<compile_context>
chip_gen: v5e
topology: v5e:2x2
jax: 0.10.0
libtpu: 0.0.40
codegen_flags: <defaults>
</compile_context>

<pallas_src>
import functools

import jax
import jax.numpy as jnp
from jax.experimental import pallas as pl
from jax.experimental.pallas import tpu as pltpu

# Set to jnp.bfloat16 in production for ~2x MXU throughput on v5e/v6e/v7x
# (accumulation stays f32 via preferred_element_type; gate math stays f32).
# Kept at f32 here so the self-check against the f32 reference is exact.
MATMUL_DTYPE = jnp.float32


def _round_up(x, m):
    return ((x + m - 1) // m) * m


# ----------------------------------------------------------------------------
# Tiled GEMM + bias kernel:  (N, K) @ (K, M) + (1, M)  -> (N, M)
# Used for (a) the hoisted per-layer input-gate GEMM and (b) the FC head.
# ----------------------------------------------------------------------------
def _matmul_bias_kernel(x_ref, w_ref, b_ref, o_ref):
    o_ref[...] = (jnp.dot(x_ref[...].astype(MATMUL_DTYPE),
                          w_ref[...].astype(MATMUL_DTYPE),
                          preferred_element_type=jnp.float32)
                  + b_ref[...])


def matmul_bias(x, w, b, *, row_tile=256, col_tile=512):
    """x: (N, K) f32, w: (K, M) f32, b: (1, M) f32 -> (N, M) f32."""
    N, K = x.shape
    M = w.shape[1]
    tn = min(row_tile, _round_up(N, 8))
    tm = min(col_tile, _round_up(M, 128))
    Np = _round_up(N, tn)
    Mp = _round_up(M, tm)

    x_p = x if Np == N else jnp.pad(x, ((0, Np - N), (0, 0)))
    w_p = w if Mp == M else jnp.pad(w, ((0, 0), (0, Mp - M)))
    b_p = b if Mp == M else jnp.pad(b, ((0, 0), (0, Mp - M)))

    out = pl.pallas_call(
        _matmul_bias_kernel,
        out_shape=jax.ShapeDtypeStruct((Np, Mp), jnp.float32),
        grid_spec=pltpu.PrefetchScalarGridSpec(
            num_scalar_prefetch=0,
            grid=(Np // tn, Mp // tm),
            in_specs=[
                pl.BlockSpec((tn, K), lambda i, j: (i, 0)),
                pl.BlockSpec((K, tm), lambda i, j: (0, j)),
                pl.BlockSpec((1, tm), lambda i, j: (0, j)),
            ],
            out_specs=pl.BlockSpec((tn, tm), lambda i, j: (i, j)),
        ),
        compiler_params=pltpu.CompilerParams(
            dimension_semantics=("parallel", "parallel")),
    )(x_p, w_p, b_p)
    return out[:N, :M]


# ----------------------------------------------------------------------------
# GRU recurrence kernel: grid over TIME CHUNKS; hidden state carried in VMEM
# scratch; the whole chunk is processed with an in-kernel fori_loop.
#
# gi_ref  : (TC, B, 3*Hp)  precomputed input gates, packed lane-aligned:
#           [0:Hp]   = W_ir x + b_ir + b_hr
#           [Hp:2Hp] = W_iz x + b_iz + b_hz
#           [2Hp:3Hp]= W_in x + b_in
# whh_ref : (Hp, 3*Hp)     hidden weights, gate g in columns [g*Hp:(g+1)*Hp]
# bhn_ref : (1, Hp)        b_hn (must stay inside r * (...))
# out_ref : (TC, B, Hp)    hidden sequence for the chunk
# ----------------------------------------------------------------------------
def _gru_rec_kernel(gi_ref, h0_ref, whh_ref, bhn_ref, out_ref, h_scratch):
    @pl.when(pl.program_id(0) == 0)
    def _():
        h_scratch[...] = h0_ref[...]

    Hp = h_scratch.shape[-1]
    T = gi_ref.shape[0]

    def step(t, h):
        gi_t = gi_ref[t]                                   # (B, 3*Hp)
        gh = jnp.dot(h.astype(MATMUL_DTYPE),
                     whh_ref[...].astype(MATMUL_DTYPE),
                     preferred_element_type=jnp.float32)   # (B, 3*Hp)
        # Gate math stays f32 (v5e VPU/EUP have no bf16 path).
        r = jax.nn.sigmoid(gi_t[:, 0:Hp] + gh[:, 0:Hp])
        zg = jax.nn.sigmoid(gi_t[:, Hp:2 * Hp] + gh[:, Hp:2 * Hp])
        n = jnp.tanh(gi_t[:, 2 * Hp:3 * Hp]
                     + r * (gh[:, 2 * Hp:3 * Hp] + bhn_ref[...]))
        h_new = (1.0 - zg) * n + zg * h
        out_ref[t] = h_new
        return h_new

    h_scratch[...] = jax.lax.fori_loop(0, T, step, h_scratch[...])


def gru_recurrence(gi, h0_p, whh_p, bhn_p, *, time_chunk=64):
    """gi: (S, B, 3*Hp), h0_p: (B, Hp), whh_p: (Hp, 3*Hp), bhn_p: (1, Hp).

    Returns the hidden sequence (S, B, Hp).
    """
    S, B, G = gi.shape
    Hp = whh_p.shape[0]
    TC = min(time_chunk, S)
    Sp = _round_up(S, TC)
    if Sp != S:
        # Trailing zero-padded timesteps only affect states after the last
        # real step; their outputs are sliced off below.
        gi = jnp.pad(gi, ((0, Sp - S), (0, 0), (0, 0)))

    hseq = pl.pallas_call(
        _gru_rec_kernel,
        out_shape=jax.ShapeDtypeStruct((Sp, B, Hp), jnp.float32),
        grid_spec=pltpu.PrefetchScalarGridSpec(
            num_scalar_prefetch=0,
            grid=(Sp // TC,),
            in_specs=[
                pl.BlockSpec((TC, B, G), lambda c: (c, 0, 0)),
                pl.BlockSpec((B, Hp), lambda c: (0, 0)),
                pl.BlockSpec((Hp, G), lambda c: (0, 0)),
                pl.BlockSpec((1, Hp), lambda c: (0, 0)),
            ],
            out_specs=pl.BlockSpec((TC, B, Hp), lambda c: (c, 0, 0)),
            scratch_shapes=[pltpu.VMEM((B, Hp), jnp.float32)],
        ),
        compiler_params=pltpu.CompilerParams(
            dimension_semantics=("arbitrary",)),   # sequential recurrence
    )(gi, h0_p, whh_p, bhn_p)
    return hseq[:S]


# ----------------------------------------------------------------------------
# Parameter packing: torch-layout params -> lane-aligned, gate-packed, padded.
# Padded rows/cols/biases are zero, so padded hidden lanes stay exactly zero
# through the recurrence and contribute nothing downstream.
# ----------------------------------------------------------------------------
def pack_params(raw, hidden_size):
    H = hidden_size
    Hp = _round_up(H, 128)
    packed = {"H": H, "Hp": Hp, "gru": [], "fc": {}}

    for li, p in enumerate(raw["gru"]):
        w_ih, w_hh = p["w_ih"], p["w_hh"]      # (3H, Din), (3H, H)
        b_ih, b_hh = p["b_ih"], p["b_hh"]      # (3H,), (3H,)
        Din = w_ih.shape[1]
        Din_p = Din if li == 0 else Hp         # later layers consume padded hidden

        wih_p = jnp.zeros((Din_p, 3 * Hp), jnp.float32)
        whh_p = jnp.zeros((Hp, 3 * Hp), jnp.float32)
        bi_p = jnp.zeros((1, 3 * Hp), jnp.float32)
        for g in range(3):                     # torch gate order: r, z, n
            wih_p = wih_p.at[:Din, g * Hp:g * Hp + H].set(w_ih[g * H:(g + 1) * H].T)
            whh_p = whh_p.at[:H, g * Hp:g * Hp + H].set(w_hh[g * H:(g + 1) * H].T)
            bias = b_ih[g * H:(g + 1) * H]
            if g < 2:                          # fold b_hr / b_hz into input gates
                bias = bias + b_hh[g * H:(g + 1) * H]
            bi_p = bi_p.at[0, g * Hp:g * Hp + H].set(bias)
        bhn_p = jnp.zeros((1, Hp), jnp.float32).at[0, :H].set(b_hh[2 * H:3 * H])
        packed["gru"].append(
            {"wih_p": wih_p, "whh_p": whh_p, "bi_p": bi_p, "bhn_p": bhn_p})

    w_fc, b_fc = raw["fc"]["w"], raw["fc"]["b"]     # (V, H), (V,)
    V = w_fc.shape[0]
    packed["V"] = V
    packed["fc"]["w_p"] = jnp.zeros((Hp, V), jnp.float32).at[:H, :].set(w_fc.T)
    packed["fc"]["b_p"] = b_fc[None, :].astype(jnp.float32)
    return packed


# ----------------------------------------------------------------------------
# Decoder forward (matches the PyTorch module's forward).
# ----------------------------------------------------------------------------
def decoder_forward(packed, decoder_input, z, initial_state=None):
    """decoder_input: (B, S, E), z: (B, L), initial_state: (num_layers, B, H) | None.

    Returns (logits (B, S, V), final_state (num_layers, B, H)).
    """
    B, S, E = decoder_input.shape
    L = z.shape[-1]
    H, Hp, V = packed["H"], packed["Hp"], packed["V"]
    layers = packed["gru"]
    num_layers = len(layers)

    # Glue (plain JAX): z broadcast + concat, then batch-first -> time-major.
    z_rep = jnp.broadcast_to(z[:, None, :], (B, S, L))
    x = jnp.concatenate([decoder_input, z_rep], axis=2)        # (B, S, E+L)
    cur = jnp.transpose(x, (1, 0, 2))                          # (S, B, Din)

    if initial_state is None:
        initial_state = jnp.zeros((num_layers, B, H), jnp.float32)
    h0_p = jnp.pad(initial_state.astype(jnp.float32),
                   ((0, 0), (0, 0), (0, Hp - H)))

    finals = []
    for li, p in enumerate(layers):
        S_, B_, Din = cur.shape
        # (1) Hoisted input-gate GEMM for the whole sequence (one big MXU GEMM).
        gi = matmul_bias(cur.reshape(S_ * B_, Din), p["wih_p"], p["bi_p"])
        gi = gi.reshape(S_, B_, 3 * Hp)
        # (2) Sequential recurrence over time chunks.
        cur = gru_recurrence(gi, h0_p[li], p["whh_p"], p["bhn_p"])   # (S, B, Hp)
        finals.append(cur[-1, :, :H])
    final_state = jnp.stack(finals, axis=0)                    # (num_layers, B, H)

    # (3) Tiled FC head on the time-major slab, then back to batch-first.
    # TODO(synk): for large H/V, fuse the last GRU layer with the FC head to
    # avoid the HBM round trip of the hidden sequence.
    logits = matmul_bias(cur.reshape(S * B, Hp),
                         packed["fc"]["w_p"], packed["fc"]["b_p"])   # (S*B, V)
    logits = jnp.transpose(logits.reshape(S, B, V), (1, 0, 2))       # (B, S, V)
    return logits, final_state


# ----------------------------------------------------------------------------
# Deterministic torch-layout parameter init (shapes match nn.GRU / nn.Linear).
# ----------------------------------------------------------------------------
def init_params(key, latent_size, decoder_size, num_layers, embed_size, vocab_size):
    raw = {"gru": [], "fc": {}}
    H = decoder_size
    scale = 1.0 / jnp.sqrt(H)
    for layer in range(num_layers):
        d_in = (embed_size + latent_size) if layer == 0 else H
        key, k1, k2, k3, k4 = jax.random.split(key, 5)
        raw["gru"].append({
            "w_ih": (jax.random.normal(k1, (3 * H, d_in)) * scale).astype(jnp.float32),
            "w_hh": (jax.random.normal(k2, (3 * H, H)) * scale).astype(jnp.float32),
            "b_ih": (jax.random.normal(k3, (3 * H,)) * scale).astype(jnp.float32),
            "b_hh": (jax.random.normal(k4, (3 * H,)) * scale).astype(jnp.float32),
        })
    key, k5, k6 = jax.random.split(key, 3)
    raw["fc"]["w"] = (jax.random.normal(k5, (vocab_size, H)) * 0.1).astype(jnp.float32)
    raw["fc"]["b"] = (jax.random.normal(k6, (vocab_size,)) * 0.1).astype(jnp.float32)
    return raw


# ----------------------------------------------------------------------------
# Pure-JAX reference (torch-layout params) for correctness check.
# ----------------------------------------------------------------------------
def decoder_forward_ref(raw, decoder_input, z, initial_state=None):
    B, S, E = decoder_input.shape
    num_layers = len(raw["gru"])
    H = raw["gru"][0]["w_hh"].shape[1]
    z_rep = jnp.broadcast_to(z[:, None, :], (B, S, z.shape[-1]))
    x = jnp.concatenate([decoder_input, z_rep], axis=2)
    if initial_state is None:
        initial_state = jnp.zeros((num_layers, B, H), jnp.float32)

    def cell(p, h, x_t):
        gi = x_t @ p["w_ih"].T + p["b_ih"]
        gh = h @ p["w_hh"].T + p["b_hh"]
        i_r, i_z, i_n = jnp.split(gi, 3, axis=-1)
        h_r, h_z, h_n = jnp.split(gh, 3, axis=-1)
        r = jax.nn.sigmoid(i_r + h_r)
        zg = jax.nn.sigmoid(i_z + h_z)
        n = jnp.tanh(i_n + r * h_n)
        return (1.0 - zg) * n + zg * h

    x_tm = jnp.transpose(x, (1, 0, 2))
    finals = []
    for layer in range(num_layers):
        p = raw["gru"][layer]

        def step(h, x_t, p=p):
            h_new = cell(p, h, x_t)
            return h_new, h_new

        h_last, x_tm = jax.lax.scan(step, initial_state[layer], x_tm)
        finals.append(h_last)
    h_seq = jnp.transpose(x_tm, (1, 0, 2))
    logits = h_seq.reshape(B * S, H) @ raw["fc"]["w"].T + raw["fc"]["b"]
    return logits.reshape(B, S, -1), jnp.stack(finals, 0)


if __name__ == "__main__":
    # Small shapes consistent with the module.
    batch, seq_len = 2, 8
    latent_size, decoder_size, num_layers, embed_size, vocab_size = 16, 32, 2, 32, 64

    key = jax.random.PRNGKey(0)
    kp, kx, kz = jax.random.split(key, 3)
    raw_params = init_params(kp, latent_size, decoder_size, num_layers,
                             embed_size, vocab_size)
    packed_params = pack_params(raw_params, decoder_size)

    decoder_input = jax.random.normal(kx, (batch, seq_len, embed_size),
                                      dtype=jnp.float32)
    z = jax.random.normal(kz, (batch, latent_size), dtype=jnp.float32)

    fwd = jax.jit(functools.partial(decoder_forward, packed_params))
    logits, final_state = fwd(decoder_input, z)
    jax.block_until_ready((logits, final_state))

    ref_logits, ref_final = decoder_forward_ref(raw_params, decoder_input, z)
    assert logits.shape == (batch, seq_len, vocab_size)
    assert final_state.shape == (num_layers, batch, decoder_size)
    assert jnp.allclose(logits, ref_logits, atol=1e-3, rtol=1e-3)
    assert jnp.allclose(final_state, ref_final, atol=1e-3, rtol=1e-3)

    print("KERNEL_OK")
</pallas_src>

<mosaic_0001>
module attributes {stable_mosaic.version = 11 : i64} {
  func.func @_matmul_bias_kernel(%arg0: i32, %arg1: i32, %arg2: memref<16x48xf32, #tpu.memory_space<vmem>>, %arg3: memref<48x384xf32, #tpu.memory_space<vmem>>, %arg4: memref<1x384xf32, #tpu.memory_space<vmem>>, %arg5: memref<16x384xf32, #tpu.memory_space<vmem>>) attributes {dimension_semantics = [#tpu.dimension_semantics<parallel>, #tpu.dimension_semantics<parallel>], iteration_bounds = array<i64: 1, 1>, scalar_prefetch = 0 : i64, scratch_operands = 0 : i64, tpu.core_type = #tpu.core_type<tc>, window_params = [{transform_indices = @transform_0, window_bounds = array<i64: 16, 48>}, {transform_indices = @transform_1, window_bounds = array<i64: 48, 384>}, {transform_indices = @transform_2, window_bounds = array<i64: 1, 384>}, {transform_indices = @transform_3, window_bounds = array<i64: 16, 384>}]} {
    %c0 = arith.constant 0 : index
    %c0_0 = arith.constant 0 : index
    %0 = vector.load %arg2[%c0, %c0_0] : memref<16x48xf32, #tpu.memory_space<vmem>>, vector<16x48xf32>
    %c0_1 = arith.constant 0 : index
    %c0_2 = arith.constant 0 : index
    %1 = vector.load %arg3[%c0_1, %c0_2] : memref<48x384xf32, #tpu.memory_space<vmem>>, vector<48x384xf32>
    %cst = arith.constant dense<0.000000e+00> : vector<16x384xf32>
    %2 = tpu.matmul %0, %1, %cst {dimension_numbers = #tpu.dot_dimension_numbers<[1], [0], [0], [1], [0, 0, 1, 1], [], []>} : vector<16x48xf32>, vector<48x384xf32>, vector<16x384xf32> -> vector<16x384xf32>
    %c0_3 = arith.constant 0 : index
    %c0_4 = arith.constant 0 : index
    %3 = vector.load %arg4[%c0_3, %c0_4] : memref<1x384xf32, #tpu.memory_space<vmem>>, vector<1x384xf32>
    %4 = vector.broadcast %3 : vector<1x384xf32> to vector<16x384xf32>
    %5 = arith.addf %2, %4 : vector<16x384xf32>
    %c0_5 = arith.constant 0 : index
    %c0_6 = arith.constant 0 : index
    %6 = vector.load %arg5[%c0_5, %c0_6] : memref<16x384xf32, #tpu.memory_space<vmem>>, vector<16x384xf32>
    tpu.vector_store %arg5[%c0_5, %c0_6], %5 {strides = array<i32>} : memref<16x384xf32, #tpu.memory_space<vmem>>, vector<16x384xf32>,
    return
  }
  func.func @transform_0(%arg0: i32, %arg1: i32) -> (i32, i32) {
    %c0_i32 = arith.constant 0 : i32
    %c0_i32_0 = arith.constant 0 : i32
    return %arg0, %c0_i32 : i32, i32
  }
  func.func @transform_1(%arg0: i32, %arg1: i32) -> (i32, i32) {
    %c0_i32 = arith.constant 0 : i32
    %c0_i32_0 = arith.constant 0 : i32
    return %c0_i32, %arg1 : i32, i32
  }
  func.func @transform_2(%arg0: i32, %arg1: i32) -> (i32, i32) {
    %c0_i32 = arith.constant 0 : i32
    %c0_i32_0 = arith.constant 0 : i32
    return %c0_i32, %arg1 : i32, i32
  }
  func.func @transform_3(%arg0: i32, %arg1: i32) -> (i32, i32) {
    %c0_i32 = arith.constant 0 : i32
    return %arg0, %arg1 : i32, i32
  }
}

module attributes {stable_mosaic.version = 11 : i64} {
  func.func @_matmul_bias_kernel(%arg0: i32, %arg1: i32, %arg2: memref<16x128xf32, #tpu.memory_space<vmem>>, %arg3: memref<128x384xf32, #tpu.memory_space<vmem>>, %arg4: memref<1x384xf32, #tpu.memory_space<vmem>>, %arg5: memref<16x384xf32, #tpu.memory_space<vmem>>) attributes {dimension_semantics = [#tpu.dimension_semantics<parallel>, #tpu.dimension_semantics<parallel>], iteration_bounds = array<i64: 1, 1>, scalar_prefetch = 0 : i64, scratch_operands = 0 : i64, tpu.core_type = #tpu.core_type<tc>, window_params = [{transform_indices = @transform_0, window_bounds = array<i64: 16, 128>}, {transform_indices = @transform_1, window_bounds = array<i64: 128, 384>}, {transform_indices = @transform_2, window_bounds = array<i64: 1, 384>}, {transform_indices = @transform_3, window_bounds = array<i64: 16, 384>}]} {
    %c0 = arith.constant 0 : index
    %c0_0 = arith.constant 0 : index
    %0 = vector.load %arg2[%c0, %c0_0] : memref<16x128xf32, #tpu.memory_space<vmem>>, vector<16x128xf32>
    %c0_1 = arith.constant 0 : index
    %c0_2 = arith.constant 0 : index
    %1 = vector.load %arg3[%c0_1, %c0_2] : memref<128x384xf32, #tpu.memory_space<vmem>>, vector<128x384xf32>
    %cst = arith.constant dense<0.000000e+00> : vector<16x384xf32>
    %2 = tpu.matmul %0, %1, %cst {dimension_numbers = #tpu.dot_dimension_numbers<[1], [0], [0], [1], [0, 0, 1, 1], [], []>} : vector<16x128xf32>, vector<128x384xf32>, vector<16x384xf32> -> vector<16x384xf32>
    %c0_3 = arith.constant 0 : index
    %c0_4 = arith.constant 0 : index
    %3 = vector.load %arg4[%c0_3, %c0_4] : memref<1x384xf32, #tpu.memory_space<vmem>>, vector<1x384xf32>
    %4 = vector.broadcast %3 : vector<1x384xf32> to vector<16x384xf32>
    %5 = arith.addf %2, %4 : vector<16x384xf32>
    %c0_5 = arith.constant 0 : index
    %c0_6 = arith.constant 0 : index
    %6 = vector.load %arg5[%c0_5, %c0_6] : memref<16x384xf32, #tpu.memory_space<vmem>>, vector<16x384xf32>
    tpu.vector_store %arg5[%c0_5, %c0_6], %5 {strides = array<i32>} : memref<16x384xf32, #tpu.memory_space<vmem>>, vector<16x384xf32>,
    return
  }
  func.func @transform_0(%arg0: i32, %arg1: i32) -> (i32, i32) {
    %c0_i32 = arith.constant 0 : i32
    %c0_i32_0 = arith.constant 0 : i32
    return %arg0, %c0_i32 : i32, i32
  }
  func.func @transform_1(%arg0: i32, %arg1: i32) -> (i32, i32) {
    %c0_i32 = arith.constant 0 : i32
    %c0_i32_0 = arith.constant 0 : i32
    return %c0_i32, %arg1 : i32, i32
  }
  func.func @transform_2(%arg0: i32, %arg1: i32) -> (i32, i32) {
    %c0_i32 = arith.constant 0 : i32
    %c0_i32_0 = arith.constant 0 : i32
    return %c0_i32, %arg1 : i32, i32
  }
  func.func @transform_3(%arg0: i32, %arg1: i32) -> (i32, i32) {
    %c0_i32 = arith.constant 0 : i32
    return %arg0, %arg1 : i32, i32
  }
}

module attributes {stable_mosaic.version = 11 : i64} {
  func.func @_gru_rec_kernel(%arg0: i32, %arg1: memref<8x2x384xf32, #tpu.memory_space<vmem>>, %arg2: memref<2x128xf32, #tpu.memory_space<vmem>>, %arg3: memref<128x384xf32, #tpu.memory_space<vmem>>, %arg4: memref<1x128xf32, #tpu.memory_space<vmem>>, %arg5: memref<8x2x128xf32, #tpu.memory_space<vmem>>, %arg6: memref<2x128xf32, #tpu.memory_space<vmem>>) attributes {dimension_semantics = [#tpu.dimension_semantics<arbitrary>], iteration_bounds = array<i64: 1>, scalar_prefetch = 0 : i64, scratch_operands = 1 : i64, tpu.core_type = #tpu.core_type<tc>, window_params = [{transform_indices = @transform_0, window_bounds = array<i64: 8, 2, 384>}, {pipeline_mode = #tpu.pipeline_mode<synchronous>, transform_indices = @transform_1, window_bounds = array<i64: 2, 128>}, {pipeline_mode = #tpu.pipeline_mode<synchronous>, transform_indices = @transform_2, window_bounds = array<i64: 128, 384>}, {pipeline_mode = #tpu.pipeline_mode<synchronous>, transform_indices = @transform_3, window_bounds = array<i64: 1, 128>}, {transform_indices = @transform_4, window_bounds = array<i64: 8, 2, 128>}]} {
    %c0_i32 = arith.constant 0 : i32
    %0 = arith.cmpi eq, %arg0, %c0_i32 : i32
    %1 = arith.extui %0 : i1 to i32
    %c0_i32_0 = arith.constant 0 : i32
    %2 = arith.cmpi ne, %1, %c0_i32_0 : i32
    scf.if %2 {
      %c0_6 = arith.constant 0 : index
      %c0_7 = arith.constant 0 : index
      %7 = vector.load %arg2[%c0_6, %c0_7] : memref<2x128xf32, #tpu.memory_space<vmem>>, vector<2x128xf32>
      %c0_8 = arith.constant 0 : index
      %c0_9 = arith.constant 0 : index
      %8 = vector.load %arg6[%c0_8, %c0_9] : memref<2x128xf32, #tpu.memory_space<vmem>>, vector<2x128xf32>
      tpu.vector_store %arg6[%c0_8, %c0_9], %7 {strides = array<i32>} : memref<2x128xf32, #tpu.memory_space<vmem>>, vector<2x128xf32>,
    } else {
    }
    %c0 = arith.constant 0 : index
    %c0_1 = arith.constant 0 : index
    %3 = vector.load %arg6[%c0, %c0_1] : memref<2x128xf32, #tpu.memory_space<vmem>>, vector<2x128xf32>
    %c0_i32_2 = arith.constant 0 : i32
    %c8_i32 = arith.constant 8 : i32
    %4 = arith.addi %c0_i32_2, %c8_i32 : i32
    %c1_i32 = arith.constant 1 : i32
    %5 = scf.for %arg7 = %c0_i32_2 to %4 step %c1_i32 iter_args(%arg8 = %3) -> (vector<2x128xf32>)  : i32 {
      %7 = arith.index_cast %arg7 : i32 to index
      %c0_6 = arith.constant 0 : index
      %c0_7 = arith.constant 0 : index
      %8 = vector.load %arg1[%7, %c0_6, %c0_7] : memref<8x2x384xf32, #tpu.memory_space<vmem>>, vector<1x2x384xf32>
      %9 = vector.shape_cast %8 : vector<1x2x384xf32> to vector<2x384xf32>
      %c0_8 = arith.constant 0 : index
      %c0_9 = arith.constant 0 : index
      %10 = vector.load %arg3[%c0_8, %c0_9] : memref<128x384xf32, #tpu.memory_space<vmem>>, vector<128x384xf32>
      %cst = arith.constant dense<0.000000e+00> : vector<2x384xf32>
      %11 = tpu.matmul %arg8, %10, %cst {dimension_numbers = #tpu.dot_dimension_numbers<[1], [0], [0], [1], [0, 0, 1, 1], [], []>} : vector<2x128xf32>, vector<128x384xf32>, vector<2x384xf32> -> vector<2x384xf32>
      %12 = vector.extract_strided_slice %9 {offsets = [0, 0], sizes = [2, 128], strides = [1, 1]} : vector<2x384xf32> to vector<2x128xf32>
      %13 = vector.extract_strided_slice %11 {offsets = [0, 0], sizes = [2, 128], strides = [1, 1]} : vector<2x384xf32> to vector<2x128xf32>
      %14 = arith.addf %12, %13 : vector<2x128xf32>
      %15 = arith.negf %14 : vector<2x128xf32>
      %16 = math.exp %15 : vector<2x128xf32>
      %cst_10 = arith.constant 1.000000e+00 : f32
      %17 = vector.broadcast %cst_10 : f32 to vector<2x128xf32>
      %18 = arith.addf %17, %16 : vector<2x128xf32>
      %19 = arith.divf %17, %18 : vector<2x128xf32>
      %20 = vector.extract_strided_slice %9 {offsets = [0, 128], sizes = [2, 128], strides = [1, 1]} : vector<2x384xf32> to vector<2x128xf32>
      %21 = vector.extract_strided_slice %11 {offsets = [0, 128], sizes = [2, 128], strides = [1, 1]} : vector<2x384xf32> to vector<2x128xf32>
      %22 = arith.addf %20, %21 : vector<2x128xf32>
      %23 = arith.negf %22 : vector<2x128xf32>
      %24 = math.exp %23 : vector<2x128xf32>
      %cst_11 = arith.constant 1.000000e+00 : f32
      %25 = vector.broadcast %cst_11 : f32 to vector<2x128xf32>
      %26 = arith.addf %25, %24 : vector<2x128xf32>
      %27 = arith.divf %25, %26 : vector<2x128xf32>
      %28 = vector.extract_strided_slice %9 {offsets = [0, 256], sizes = [2, 128], strides = [1, 1]} : vector<2x384xf32> to vector<2x128xf32>
      %29 = vector.extract_strided_slice %11 {offsets = [0, 256], sizes = [2, 128], strides = [1, 1]} : vector<2x384xf32> to vector<2x128xf32>
      %c0_12 = arith.constant 0 : index
      %c0_13 = arith.constant 0 : index
      %30 = vector.load %arg4[%c0_12, %c0_13] : memref<1x128xf32, #tpu.memory_space<vmem>>, vector<1x128xf32>
      %31 = vector.broadcast %30 : vector<1x128xf32> to vector<2x128xf32>
      %32 = arith.addf %29, %31 : vector<2x128xf32>
      %33 = arith.mulf %19, %32 : vector<2x128xf32>
      %34 = arith.addf %28, %33 : vector<2x128xf32>
      %35 = math.tanh %34 : vector<2x128xf32>
      %cst_14 = arith.constant 1.000000e+00 : f32
      %36 = vector.broadcast %cst_14 : f32 to vector<2x128xf32>
      %37 = arith.subf %36, %27 : vector<2x128xf32>
      %38 = arith.mulf %37, %35 : vector<2x128xf32>
      %39 = arith.mulf %27, %arg8 : vector<2x128xf32>
      %40 = arith.addf %38, %39 : vector<2x128xf32>
      %41 = arith.index_cast %arg7 : i32 to index
      %c0_15 = arith.constant 0 : index
      %c0_16 = arith.constant 0 : index
      %42 = vector.load %arg5[%41, %c0_15, %c0_16] : memref<8x2x128xf32, #tpu.memory_space<vmem>>, vector<1x2x128xf32>
      %43 = vector.shape_cast %42 : vector<1x2x128xf32> to vector<2x128xf32>
      %44 = vector.shape_cast %40 : vector<2x128xf32> to vector<1x2x128xf32>
      tpu.vector_store %arg5[%41, %c0_15, %c0_16], %44 {strides = array<i32>} : memref<8x2x128xf32, #tpu.memory_space<vmem>>, vector<1x2x128xf32>,
      scf.yield %40 : vector<2x128xf32>
    }
    %c8_i32_3 = arith.constant 8 : i32
    %c0_4 = arith.constant 0 : index
    %c0_5 = arith.constant 0 : index
    %6 = vector.load %arg6[%c0_4, %c0_5] : memref<2x128xf32, #tpu.memory_space<vmem>>, vector<2x128xf32>
    tpu.vector_store %arg6[%c0_4, %c0_5], %5 {strides = array<i32>} : memref<2x128xf32, #tpu.memory_space<vmem>>, vector<2x128xf32>,
    return
  }
  func.func @transform_0(%arg0: i32) -> (i32, i32, i32) {
    %c0_i32 = arith.constant 0 : i32
    %c0_i32_0 = arith.constant 0 : i32
    %c0_i32_1 = arith.constant 0 : i32
    return %arg0, %c0_i32, %c0_i32_0 : i32, i32, i32
  }
  func.func @transform_1(%arg0: i32) -> (i32, i32) {
    %c0_i32 = arith.constant 0 : i32
    %c0_i32_0 = arith.constant 0 : i32
    %c0_i32_1 = arith.constant 0 : i32
    return %c0_i32, %c0_i32_0 : i32, i32
  }
  func.func @transform_2(%arg0: i32) -> (i32, i32) {
    %c0_i32 = arith.constant 0 : i32
    %c0_i32_0 = arith.constant 0 : i32
    %c0_i32_1 = arith.constant 0 : i32
    return %c0_i32, %c0_i32_0 : i32, i32
  }
  func.func @transform_3(%arg0: i32) -> (i32, i32) {
    %c0_i32 = arith.constant 0 : i32
    %c0_i32_0 = arith.constant 0 : i32
    %c0_i32_1 = arith.constant 0 : i32
    return %c0_i32, %c0_i32_0 : i32, i32
  }
  func.func @transform_4(%arg0: i32) -> (i32, i32, i32) {
    %c0_i32 = arith.constant 0 : i32
    %c0_i32_0 = arith.constant 0 : i32
    %c0_i32_1 = arith.constant 0 : i32
    return %arg0, %c0_i32, %c0_i32_0 : i32, i32, i32
  }
}

module attributes {stable_mosaic.version = 11 : i64} {
  func.func @_matmul_bias_kernel(%arg0: i32, %arg1: i32, %arg2: memref<16x128xf32, #tpu.memory_space<vmem>>, %arg3: memref<128x128xf32, #tpu.memory_space<vmem>>, %arg4: memref<1x128xf32, #tpu.memory_space<vmem>>, %arg5: memref<16x128xf32, #tpu.memory_space<vmem>>) attributes {dimension_semantics = [#tpu.dimension_semantics<parallel>, #tpu.dimension_semantics<parallel>], iteration_bounds = array<i64: 1, 1>, scalar_prefetch = 0 : i64, scratch_operands = 0 : i64, tpu.core_type = #tpu.core_type<tc>, window_params = [{transform_indices = @transform_0, window_bounds = array<i64: 16, 128>}, {transform_indices = @transform_1, window_bounds = array<i64: 128, 128>}, {transform_indices = @transform_2, window_bounds = array<i64: 1, 128>}, {transform_indices = @transform_3, window_bounds = array<i64: 16, 128>}]} {
    %c0 = arith.constant 0 : index
    %c0_0 = arith.constant 0 : index
    %0 = vector.load %arg2[%c0, %c0_0] : memref<16x128xf32, #tpu.memory_space<vmem>>, vector<16x128xf32>
    %c0_1 = arith.constant 0 : index
    %c0_2 = arith.constant 0 : index
    %1 = vector.load %arg3[%c0_1, %c0_2] : memref<128x128xf32, #tpu.memory_space<vmem>>, vector<128x128xf32>
    %cst = arith.constant dense<0.000000e+00> : vector<16x128xf32>
    %2 = tpu.matmul %0, %1, %cst {dimension_numbers = #tpu.dot_dimension_numbers<[1], [0], [0], [1], [0, 0, 1, 1], [], []>} : vector<16x128xf32>, vector<128x128xf32>, vector<16x128xf32> -> vector<16x128xf32>
    %c0_3 = arith.constant 0 : index
    %c0_4 = arith.constant 0 : index
    %3 = vector.load %arg4[%c0_3, %c0_4] : memref<1x128xf32, #tpu.memory_space<vmem>>, vector<1x128xf32>
    %4 = vector.broadcast %3 : vector<1x128xf32> to vector<16x128xf32>
    %5 = arith.addf %2, %4 : vector<16x128xf32>
    %c0_5 = arith.constant 0 : index
    %c0_6 = arith.constant 0 : index
    %6 = vector.load %arg5[%c0_5, %c0_6] : memref<16x128xf32, #tpu.memory_space<vmem>>, vector<16x128xf32>
    tpu.vector_store %arg5[%c0_5, %c0_6], %5 {strides = array<i32>} : memref<16x128xf32, #tpu.memory_space<vmem>>, vector<16x128xf32>,
    return
  }
  func.func @transform_0(%arg0: i32, %arg1: i32) -> (i32, i32) {
    %c0_i32 = arith.constant 0 : i32
    %c0_i32_0 = arith.constant 0 : i32
    return %arg0, %c0_i32 : i32, i32
  }
  func.func @transform_1(%arg0: i32, %arg1: i32) -> (i32, i32) {
    %c0_i32 = arith.constant 0 : i32
    %c0_i32_0 = arith.constant 0 : i32
    return %c0_i32, %arg1 : i32, i32
  }
  func.func @transform_2(%arg0: i32, %arg1: i32) -> (i32, i32) {
    %c0_i32 = arith.constant 0 : i32
    %c0_i32_0 = arith.constant 0 : i32
    return %c0_i32, %arg1 : i32, i32
  }
  func.func @transform_3(%arg0: i32, %arg1: i32) -> (i32, i32) {
    %c0_i32 = arith.constant 0 : i32
    return %arg0, %arg1 : i32, i32
  }
}

</mosaic_0001>

<llo_original>
// kernel: decoder_forward.7
$region0: #{decoder_forward.7}
  #allocation0 [shape = 'u32[]', space=smem, size = 0x4, offset = 0x4, fixed_abs, tag = 'smem constant byte address 0x4 - core index']
  #allocation1 [shape = 'u32[72,128]{1,0:T(1,128)}', space=vmem, size = 0x9000, scoped, tag = 'internal scratch']
  %s0 = inlined_call_operand.vmem [shape: f32[16,128], index: 0, kind: input, shape index: {}]
  %s1 = inlined_call_operand.hbm [shape: f32[128,384], index: 1, kind: input, shape index: {}]
  %s2 = inlined_call_operand.vmem [shape: f32[1,384], index: 2, kind: input, shape index: {}]
  %s3 = inlined_call_operand.vmem [shape: f32[16,384], index: 3, kind: output, shape index: {}]
  %s4 = sld [smem:[#allocation0]]
  $region26: #{decoder_forward.7} parent=0
    _
  %s6 = ssub.s32 1, %s4
  %s7 = scalar_select 0, %s6, %s4
  $region1: #{decoder_forward.7} parent=0
    #allocation2 [shape = 'u8[196608]{0}', space=vmem, size = 0x30000, scoped, tag = 'input window, operand 1, single buffered']
    #allocation3 [shape = 's32[1]{0}', space=sflag, size = 0x4, scoped, tag = 'scoped memory for decoder_forward.7']
    %8 = vsyncpa [#allocation3], 0
    // Predicated region
    $region2: #{decoder_forward.7} parent=1 // pred_check
      _
    $region3: #{decoder_forward.7} parent=1 // pred_check_branch
      %10 = sbr.rel (0) target = $region5
    $region4: #{decoder_forward.7} parent=1 // pred_region
      _
    $region5: #{decoder_forward.7} parent=1 // pred_fallthru
      _
    // Predicated region
    $region6: #{decoder_forward.7} parent=1 // pred_check
      _
    $region7: #{decoder_forward.7} parent=1 // pred_check_branch
      %12 = sbr.rel (0) target = $region9
    $region8: #{decoder_forward.7} parent=1 // pred_region
      %14 = vsyncadd [#allocation3], 0
      %s15 = sshll.u32 %s1, 4
      %s16 = int_to_ptr.hbm [resolvable:$true] %s15
      %s17 = sshll.u32 [#allocation2], 4
      %s18 = int_to_ptr.vmem [resolvable:$true] %s17
      %23 = dma.hbm_to_vmem [thread:$0]  %s16, 6144, %s18, [#allocation3], 384, 384, 24
    $region9: #{decoder_forward.7} parent=1 // pred_fallthru
      _
    // Predicated region
    $region10: #{decoder_forward.7} parent=1 // pred_check
      _
    $region11: #{decoder_forward.7} parent=1 // pred_check_branch
      %25 = sbr.rel (0) target = $region13
    $region12: #{decoder_forward.7} parent=1 // pred_region
      _
    $region13: #{decoder_forward.7} parent=1 // pred_fallthru
      _
    // Predicated region
    $region14: #{decoder_forward.7} parent=1 // pred_check
      _
    $region15: #{decoder_forward.7} parent=1 // pred_check_branch
      %27 = sbr.rel (0) target = $region17
    $region16: #{decoder_forward.7} parent=1 // pred_region
      %29 = dma.done [#allocation3], 6144
    $region17: #{decoder_forward.7} parent=1 // pred_fallthru
      _
    %v30 = vld [vmem:[%s0] sm:$0xff]
    %v31 = vld [vmem:[%s0 + $0x8] sm:$0xff]
    %v32 = vld [vmem:[#allocation2] sm:$0xff]
    %v33 = vld [vmem:[#allocation2 + $0x8] sm:$0xff]
    %v34 = vld [vmem:[#allocation2 + $0x10] sm:$0xff]
    %v35 = vld [vmem:[#allocation2 + $0x18] sm:$0xff]
    %v36 = vld [vmem:[#allocation2 + $0x20] sm:$0xff]
    %v37 = vld [vmem:[#allocation2 + $0x28] sm:$0xff]
    %v38 = vld [vmem:[#allocation2 + $0x30] sm:$0xff]
    %v39 = vld [vmem:[#allocation2 + $0x38] sm:$0xff]
    %v40 = vld [vmem:[#allocation2 + $0x40] sm:$0xff]
    %v41 = vld [vmem:[#allocation2 + $0x48] sm:$0xff]
    %v42 = vld [vmem:[#allocation2 + $0x50] sm:$0xff]
    %v43 = vld [vmem:[#allocation2 + $0x58] sm:$0xff]
    %v44 = vld [vmem:[#allocation2 + $0x60] sm:$0xff]
    %v45 = vld [vmem:[#allocation2 + $0x68] sm:$0xff]
    %v46 = vld [vmem:[#allocation2 + $0x70] sm:$0xff]
    %v47 = vld [vmem:[#allocation2 + $0x78] sm:$0xff]
    %v48 = vld [vmem:[#allocation2 + $0x80] sm:$0xff]
    %v49 = vld [vmem:[#allocation2 + $0x88] sm:$0xff]
    %v50 = vld [vmem:[#allocation2 + $0x90] sm:$0xff]
    %v51 = vld [vmem:[#allocation2 + $0x98] sm:$0xff]
    %v52 = vld [vmem:[#allocation2 + $0xa0] sm:$0xff]
    %v53 = vld [vmem:[#allocation2 + $0xa8] sm:$0xff]
    %v54 = vld [vmem:[#allocation2 + $0xb0] sm:$0xff]
    %v55 = vld [vmem:[#allocation2 + $0xb8] sm:$0xff]
    %v56 = vld [vmem:[#allocation2 + $0xc0] sm:$0xff]
    %v57 = vld [vmem:[#allocation2 + $0xc8] sm:$0xff]
    %v58 = vld [vmem:[#allocation2 + $0xd0] sm:$0xff]
    %v59 = vld [vmem:[#allocation2 + $0xd8] sm:$0xff]
    %v60 = vld [vmem:[#allocation2 + $0xe0] sm:$0xff]
    %v61 = vld [vmem:[#allocation2 + $0xe8] sm:$0xff]
    %v62 = vld [vmem:[#allocation2 + $0xf0] sm:$0xff]
    %v63 = vld [vmem:[#allocation2 + $0xf8] sm:$0xff]
    %v64 = vld [vmem:[#allocation2 + $0x100] sm:$0xff]
    %v65 = vld [vmem:[#allocation2 + $0x108] sm:$0xff]
    %v66 = vld [vmem:[#allocation2 + $0x110] sm:$0xff]
    %v67 = vld [vmem:[#allocation2 + $0x118] sm:$0xff]
    %v68 = vld [vmem:[#allocation2 + $0x120] sm:$0xff]
    %v69 = vld [vmem:[#allocation2 + $0x128] sm:$0xff]
    %v70 = vld [vmem:[#allocation2 + $0x130] sm:$0xff]
    %v71 = vld [vmem:[#allocation2 + $0x138] sm:$0xff]
    %v72 = vld [vmem:[#allocation2 + $0x140] sm:$0xff]
    %v73 = vld [vmem:[#allocation2 + $0x148] sm:$0xff]
    %v74 = vld [vmem:[#allocation2 + $0x150] sm:$0xff]
    %v75 = vld [vmem:[#allocation2 + $0x158] sm:$0xff]
    %v76 = vld [vmem:[#allocation2 + $0x160] sm:$0xff]
    %v77 = vld [vmem:[#allocation2 + $0x168] sm:$0xff]
    %v78 = vld [vmem:[#allocation2 + $0x170] sm:$0xff]
    %v79 = vld [vmem:[#allocation2 + $0x178] sm:$0xff]
    %v80 = vld [vmem:[%s2] sm:$0x7]
    %v82 = vperm.slane %v80, 0
    %v83 = vperm.slane %v80, 1
    %v84 = vperm.slane %v80, 2
    %88 = vmatpush.msra.mxu0 %v77
    %89 = vmatpush.msra.mxu0 %v74
    %90 = vmatpush.msra.mxu0 %v71
    %91 = vmatpush.msra.mxu0 %v68
    %92 = vmatpush.msra.mxu0 %v65
    %93 = vmatpush.msra.mxu0 %v62
    %94 = vmatpush.msra.mxu0 %v59
    %95 = vmatpush.msra.mxu0 %v56
    %96 = vmatpush.msra.mxu0 %v53
    %97 = vmatpush.msra.mxu0 %v50
    %98 = vmatpush.msra.mxu0 %v47
    %99 = vmatpush.msra.mxu0 %v44
    %100 = vmatpush.msra.mxu0 %v41
    %101 = vmatpush.msra.mxu0 %v38
    %102 = vmatpush.msra.mxu0 %v35
    %103 = vmatpush.msra.mxu0 %v32
    %104 = vmatmul.f32.gmra.mxu0 %v30
    %v105 = vpop.f32.mrf.mxu0
    %v106 = vadd.f32 %v82, %v105
    %107 = vmatmul.f32.gmra.mxu0 %v31
    %v108 = vpop.f32.mrf.mxu0
    %v109 = vadd.f32 %v82, %v108
    %110 = vdwg.mxu0
    %111 = vmatpush.msra.mxu0 %v78
    %112 = vmatpush.msra.mxu0 %v75
    %113 = vmatpush.msra.mxu0 %v72
    %114 = vmatpush.msra.mxu0 %v69
    %115 = vmatpush.msra.mxu0 %v66
    %116 = vmatpush.msra.mxu0 %v63
    %117 = vmatpush.msra.mxu0 %v60
    %118 = vmatpush.msra.mxu0 %v57
    %119 = vmatpush.msra.mxu0 %v54
    %120 = vmatpush.msra.mxu0 %v51
    %121 = vmatpush.msra.mxu0 %v48
    %122 = vmatpush.msra.mxu0 %v45
    %123 = vmatpush.msra.mxu0 %v42
    %124 = vmatpush.msra.mxu0 %v39
    %125 = vmatpush.msra.mxu0 %v36
    %126 = vmatpush.msra.mxu0 %v33
    %127 = vmatmul.f32.gmra.mxu0 %v30
    %v128 = vpop.f32.mrf.mxu0
    %v129 = vadd.f32 %v83, %v128
    %130 = vmatmul.f32.gmra.mxu0 %v31
    %v131 = vpop.f32.mrf.mxu0
    %v132 = vadd.f32 %v83, %v131
    %133 = vdwg.mxu0
    %134 = vmatpush.msra.mxu0 %v79
    %135 = vmatpush.msra.mxu0 %v76
    %136 = vmatpush.msra.mxu0 %v73
    %137 = vmatpush.msra.mxu0 %v70
    %138 = vmatpush.msra.mxu0 %v67
    %139 = vmatpush.msra.mxu0 %v64
    %140 = vmatpush.msra.mxu0 %v61
    %141 = vmatpush.msra.mxu0 %v58
    %142 = vmatpush.msra.mxu0 %v55
    %143 = vmatpush.msra.mxu0 %v52
    %144 = vmatpush.msra.mxu0 %v49
    %145 = vmatpush.msra.mxu0 %v46
    %146 = vmatpush.msra.mxu0 %v43
    %147 = vmatpush.msra.mxu0 %v40
    %148 = vmatpush.msra.mxu0 %v37
    %149 = vmatpush.msra.mxu0 %v34
    %150 = vmatmul.f32.gmra.mxu0 %v30
    %v151 = vpop.f32.mrf.mxu0
    %v152 = vadd.f32 %v84, %v151
    %153 = vmatmul.f32.gmra.mxu0 %v31
    %v154 = vpop.f32.mrf.mxu0
    %v155 = vadd.f32 %v84, %v154
    %156 = vdwg.mxu0
    %157 = vst [vmem:[%s3] sm:$0xff] %v106
    %158 = vst [vmem:[%s3 + $0x8] sm:$0xff] %v129
    %159 = vst [vmem:[%s3 + $0x10] sm:$0xff] %v152
    %160 = vst [vmem:[%s3 + $0x18] sm:$0xff] %v109
    %161 = vst [vmem:[%s3 + $0x20] sm:$0xff] %v132
    %162 = vst [vmem:[%s3 + $0x28] sm:$0xff] %v155
    // Predicated region
    $region18: #{decoder_forward.7} parent=1 // pred_check
      _
    $region19: #{decoder_forward.7} parent=1 // pred_check_branch
      %164 = sbr.rel (0) target = $region21
    $region20: #{decoder_forward.7} parent=1 // pred_region
      _
    $region21: #{decoder_forward.7} parent=1 // pred_fallthru
      _
    // Predicated region
    $region22: #{decoder_forward.7} parent=1 // pred_check
      _
    $region23: #{decoder_forward.7} parent=1 // pred_check_branch
      %166 = sbr.rel (0) target = $region25
    $region24: #{decoder_forward.7} parent=1 // pred_region
      _
    $region25: #{decoder_forward.7} parent=1 // pred_fallthru
      _
    %167 = vsyncpa [#allocation3], 1

// kernel: decoder_forward.5
$region0: #{decoder_forward.5}
  #allocation0 [shape = 'u32[]', space=smem, size = 0x4, offset = 0x4, fixed_abs, tag = 'smem constant byte address 0x4 - core index']
  #allocation1 [shape = 'u32[72,128]{1,0:T(1,128)}', space=vmem, size = 0x9000, scoped, tag = 'internal scratch']
  %s0 = inlined_call_operand.vmem [shape: f32[16,48], index: 0, kind: input, shape index: {}]
  %s1 = inlined_call_operand.hbm [shape: f32[48,384], index: 1, kind: input, shape index: {}]
  %s2 = inlined_call_operand.vmem [shape: f32[1,384], index: 2, kind: input, shape index: {}]
  %s3 = inlined_call_operand.vmem [shape: f32[16,384], index: 3, kind: output, shape index: {}]
  %s4 = sld [smem:[#allocation0]]
  $region26: #{decoder_forward.5} parent=0
    _
  %s6 = ssub.s32 1, %s4
  %s7 = scalar_select 0, %s6, %s4
  $region1: #{decoder_forward.5} parent=0
    #allocation2 [shape = 'u8[73728]{0}', space=vmem, size = 0x12000, scoped, tag = 'input window, operand 1, single buffered']
    #allocation3 [shape = 's32[1]{0}', space=sflag, size = 0x4, scoped, tag = 'scoped memory for decoder_forward.5']
    %8 = vsyncpa [#allocation3], 0
    // Predicated region
    $region2: #{decoder_forward.5} parent=1 // pred_check
      _
    $region3: #{decoder_forward.5} parent=1 // pred_check_branch
      %10 = sbr.rel (0) target = $region5
    $region4: #{decoder_forward.5} parent=1 // pred_region
      _
    $region5: #{decoder_forward.5} parent=1 // pred_fallthru
      _
    // Predicated region
    $region6: #{decoder_forward.5} parent=1 // pred_check
      _
    $region7: #{decoder_forward.5} parent=1 // pred_check_branch
      %12 = sbr.rel (0) target = $region9
    $region8: #{decoder_forward.5} parent=1 // pred_region
      %14 = vsyncadd [#allocation3], 0
      %s15 = sshll.u32 %s1, 4
      %s16 = int_to_ptr.hbm [resolvable:$true] %s15
      %s17 = sshll.u32 [#allocation2], 4
      %s18 = int_to_ptr.vmem [resolvable:$true] %s17
      %23 = dma.hbm_to_vmem [thread:$0]  %s16, 2304, %s18, [#allocation3], 384, 384, 24
    $region9: #{decoder_forward.5} parent=1 // pred_fallthru
      _
    // Predicated region
    $region10: #{decoder_forward.5} parent=1 // pred_check
      _
    $region11: #{decoder_forward.5} parent=1 // pred_check_branch
      %25 = sbr.rel (0) target = $region13
    $region12: #{decoder_forward.5} parent=1 // pred_region
      _
    $region13: #{decoder_forward.5} parent=1 // pred_fallthru
      _
    // Predicated region
    $region14: #{decoder_forward.5} parent=1 // pred_check
      _
    $region15: #{decoder_forward.5} parent=1 // pred_check_branch
      %27 = sbr.rel (0) target = $region17
    $region16: #{decoder_forward.5} parent=1 // pred_region
      %29 = dma.done [#allocation3], 2304
    $region17: #{decoder_forward.5} parent=1 // pred_fallthru
      _
    %v30 = vld [vmem:[%s0] sm:$0xff]
    %v31 = vld [vmem:[%s0 + $0x8] sm:$0xff]
    %v32 = vld [vmem:[#allocation2] sm:$0xff]
    %v33 = vld [vmem:[#allocation2 + $0x8] sm:$0xff]
    %v34 = vld [vmem:[#allocation2 + $0x10] sm:$0xff]
    %v35 = vld [vmem:[#allocation2 + $0x18] sm:$0xff]
    %v36 = vld [vmem:[#allocation2 + $0x20] sm:$0xff]
    %v37 = vld [vmem:[#allocation2 + $0x28] sm:$0xff]
    %v38 = vld [vmem:[#allocation2 + $0x30] sm:$0xff]
    %v39 = vld [vmem:[#allocation2 + $0x38] sm:$0xff]
    %v40 = vld [vmem:[#allocation2 + $0x40] sm:$0xff]
    %v41 = vld [vmem:[#allocation2 + $0x48] sm:$0xff]
    %v42 = vld [vmem:[#allocation2 + $0x50] sm:$0xff]
    %v43 = vld [vmem:[#allocation2 + $0x58] sm:$0xff]
    %v44 = vld [vmem:[#allocation2 + $0x60] sm:$0xff]
    %v45 = vld [vmem:[#allocation2 + $0x68] sm:$0xff]
    %v46 = vld [vmem:[#allocation2 + $0x70] sm:$0xff]
    %v47 = vld [vmem:[#allocation2 + $0x78] sm:$0xff]
    %v48 = vld [vmem:[#allocation2 + $0x80] sm:$0xff]
    %v49 = vld [vmem:[#allocation2 + $0x88] sm:$0xff]
    %v50 = vld [vmem:[%s2] sm:$0x7]
    %v52 = vperm.slane %v50, 0
    %v53 = vperm.slane %v50, 1
    %v54 = vperm.slane %v50, 2
    %vm58 = vcmask 392192
    %v60 = vsel %vm58, %v30, 0
    %v63 = vsel %vm58, %v31, 0
    %65 = vmatpush.msra.mxu0 0.0
    %66 = vmatpush.msra.mxu0 0.0
    %67 = vmatpush.msra.mxu0 0.0
    %68 = vmatpush.msra.mxu0 0.0
    %69 = vmatpush.msra.mxu0 0.0
    %70 = vmatpush.msra.mxu0 0.0
    %71 = vmatpush.msra.mxu0 0.0
    %72 = vmatpush.msra.mxu0 0.0
    %73 = vmatpush.msra.mxu0 0.0
    %74 = vmatpush.msra.mxu0 0.0
    %75 = vmatpush.msra.mxu0 %v47
    %76 = vmatpush.msra.mxu0 %v44
    %77 = vmatpush.msra.mxu0 %v41
    %78 = vmatpush.msra.mxu0 %v38
    %79 = vmatpush.msra.mxu0 %v35
    %80 = vmatpush.msra.mxu0 %v32
    %81 = vmatmul.f32.gmra.mxu0 %v60
    %v82 = vpop.f32.mrf.mxu0
    %v83 = vadd.f32 %v52, %v82
    %84 = vmatmul.f32.gmra.mxu0 %v63
    %v85 = vpop.f32.mrf.mxu0
    %v86 = vadd.f32 %v52, %v85
    %87 = vdwg.mxu0
    %88 = vmatpush.msra.mxu0 0.0
    %89 = vmatpush.msra.mxu0 0.0
    %90 = vmatpush.msra.mxu0 0.0
    %91 = vmatpush.msra.mxu0 0.0
    %92 = vmatpush.msra.mxu0 0.0
    %93 = vmatpush.msra.mxu0 0.0
    %94 = vmatpush.msra.mxu0 0.0
    %95 = vmatpush.msra.mxu0 0.0
    %96 = vmatpush.msra.mxu0 0.0
    %97 = vmatpush.msra.mxu0 0.0
    %98 = vmatpush.msra.mxu0 %v48
    %99 = vmatpush.msra.mxu0 %v45
    %100 = vmatpush.msra.mxu0 %v42
    %101 = vmatpush.msra.mxu0 %v39
    %102 = vmatpush.msra.mxu0 %v36
    %103 = vmatpush.msra.mxu0 %v33
    %104 = vmatmul.f32.gmra.mxu0 %v60
    %v105 = vpop.f32.mrf.mxu0
    %v106 = vadd.f32 %v53, %v105
    %107 = vmatmul.f32.gmra.mxu0 %v63
    %v108 = vpop.f32.mrf.mxu0
    %v109 = vadd.f32 %v53, %v108
    %110 = vdwg.mxu0
    %111 = vmatpush.msra.mxu0 0.0
    %112 = vmatpush.msra.mxu0 0.0
    %113 = vmatpush.msra.mxu0 0.0
    %114 = vmatpush.msra.mxu0 0.0
    %115 = vmatpush.msra.mxu0 0.0
    %116 = vmatpush.msra.mxu0 0.0
    %117 = vmatpush.msra.mxu0 0.0
    %118 = vmatpush.msra.mxu0 0.0
    %119 = vmatpush.msra.mxu0 0.0
    %120 = vmatpush.msra.mxu0 0.0
    %121 = vmatpush.msra.mxu0 %v49
    %122 = vmatpush.msra.mxu0 %v46
    %123 = vmatpush.msra.mxu0 %v43
    %124 = vmatpush.msra.mxu0 %v40
    %125 = vmatpush.msra.mxu0 %v37
    %126 = vmatpush.msra.mxu0 %v34
    %127 = vmatmul.f32.gmra.mxu0 %v60
    %v128 = vpop.f32.mrf.mxu0
    %v129 = vadd.f32 %v54, %v128
    %130 = vmatmul.f32.gmra.mxu0 %v63
    %v131 = vpop.f32.mrf.mxu0
    %v132 = vadd.f32 %v54, %v131
    %133 = vdwg.mxu0
    %134 = vst [vmem:[%s3] sm:$0xff] %v83
    %135 = vst [vmem:[%s3 + $0x8] sm:$0xff] %v106
    %136 = vst [vmem:[%s3 + $0x10] sm:$0xff] %v129
    %137 = vst [vmem:[%s3 + $0x18] sm:$0xff] %v86
    %138 = vst [vmem:[%s3 + $0x20] sm:$0xff] %v109
    %139 = vst [vmem:[%s3 + $0x28] sm:$0xff] %v132
    // Predicated region
    $region18: #{decoder_forward.5} parent=1 // pred_check
      _
    $region19: #{decoder_forward.5} parent=1 // pred_check_branch
      %141 = sbr.rel (0) target = $region21
    $region20: #{decoder_forward.5} parent=1 // pred_region
      _
    $region21: #{decoder_forward.5} parent=1 // pred_fallthru
      _
    // Predicated region
    $region22: #{decoder_forward.5} parent=1 // pred_check
      _
    $region23: #{decoder_forward.5} parent=1 // pred_check_branch
      %143 = sbr.rel (0) target = $region25
    $region24: #{decoder_forward.5} parent=1 // pred_region
      _
    $region25: #{decoder_forward.5} parent=1 // pred_fallthru
      _
    %144 = vsyncpa [#allocation3], 1

// kernel: decoder_forward.9
$region0: #{decoder_forward.9}
  #allocation0 [shape = 'u32[]', space=smem, size = 0x4, offset = 0x4, fixed_abs, tag = 'smem constant byte address 0x4 - core index']
  #allocation1 [shape = 'u32[72,128]{1,0:T(1,128)}', space=vmem, size = 0x9000, scoped, tag = 'internal scratch']
  %s0 = inlined_call_operand.vmem [shape: f32[16,128], index: 0, kind: input, shape index: {}]
  %s1 = inlined_call_operand.vmem [shape: f32[128,128], index: 1, kind: input, shape index: {}]
  %s2 = inlined_call_operand.vmem [shape: f32[1,128], index: 2, kind: input, shape index: {}]
  %s3 = inlined_call_operand.vmem [shape: f32[16,128], index: 3, kind: output, shape index: {}]
  %s4 = sld [smem:[#allocation0]]
  $region22: #{decoder_forward.9} parent=0
    _
  %s6 = ssub.s32 1, %s4
  %s7 = scalar_select 0, %s6, %s4
  // Predicated region
  $region2: #{decoder_forward.9} parent=0 // pred_check
    _
  $region3: #{decoder_forward.9} parent=0 // pred_check_branch
    %9 = sbr.rel (0) target = $region5
  $region4: #{decoder_forward.9} parent=0 // pred_region
    _
  $region5: #{decoder_forward.9} parent=0 // pred_fallthru
    _
  // Predicated region
  $region6: #{decoder_forward.9} parent=0 // pred_check
    _
  $region7: #{decoder_forward.9} parent=0 // pred_check_branch
    %11 = sbr.rel (0) target = $region9
  $region8: #{decoder_forward.9} parent=0 // pred_region
    _
  $region9: #{decoder_forward.9} parent=0 // pred_fallthru
    _
  // Predicated region
  $region10: #{decoder_forward.9} parent=0 // pred_check
    _
  $region11: #{decoder_forward.9} parent=0 // pred_check_branch
    %13 = sbr.rel (0) target = $region13
  $region12: #{decoder_forward.9} parent=0 // pred_region
    _
  $region13: #{decoder_forward.9} parent=0 // pred_fallthru
    _
  %v14 = vld [vmem:[%s0] sm:$0xff]
  %v15 = vld [vmem:[%s0 + $0x8] sm:$0xff]
  %v16 = vld [vmem:[%s1] sm:$0xff]
  %v17 = vld [vmem:[%s1 + $0x8] sm:$0xff]
  %v18 = vld [vmem:[%s1 + $0x10] sm:$0xff]
  %v19 = vld [vmem:[%s1 + $0x18] sm:$0xff]
  %v20 = vld [vmem:[%s1 + $0x20] sm:$0xff]
  %v21 = vld [vmem:[%s1 + $0x28] sm:$0xff]
  %v22 = vld [vmem:[%s1 + $0x30] sm:$0xff]
  %v23 = vld [vmem:[%s1 + $0x38] sm:$0xff]
  %v24 = vld [vmem:[%s1 + $0x40] sm:$0xff]
  %v25 = vld [vmem:[%s1 + $0x48] sm:$0xff]
  %v26 = vld [vmem:[%s1 + $0x50] sm:$0xff]
  %v27 = vld [vmem:[%s1 + $0x58] sm:$0xff]
  %v28 = vld [vmem:[%s1 + $0x60] sm:$0xff]
  %v29 = vld [vmem:[%s1 + $0x68] sm:$0xff]
  %v30 = vld [vmem:[%s1 + $0x70] sm:$0xff]
  %v31 = vld [vmem:[%s1 + $0x78] sm:$0xff]
  %v32 = vld [vmem:[%s2] sm:$0x1]
  %v34 = vperm.slane %v32, 0
  %36 = vmatpush.msra.mxu0 %v31
  %37 = vmatpush.msra.mxu0 %v30
  %38 = vmatpush.msra.mxu0 %v29
  %39 = vmatpush.msra.mxu0 %v28
  %40 = vmatpush.msra.mxu0 %v27
  %41 = vmatpush.msra.mxu0 %v26
  %42 = vmatpush.msra.mxu0 %v25
  %43 = vmatpush.msra.mxu0 %v24
  %44 = vmatpush.msra.mxu0 %v23
  %45 = vmatpush.msra.mxu0 %v22
  %46 = vmatpush.msra.mxu0 %v21
  %47 = vmatpush.msra.mxu0 %v20
  %48 = vmatpush.msra.mxu0 %v19
  %49 = vmatpush.msra.mxu0 %v18
  %50 = vmatpush.msra.mxu0 %v17
  %51 = vmatpush.msra.mxu0 %v16
  %52 = vmatmul.f32.gmra.mxu0 %v14
  %v53 = vpop.f32.mrf.mxu0
  %v54 = vadd.f32 %v34, %v53
  %55 = vmatmul.f32.gmra.mxu0 %v15
  %v56 = vpop.f32.mrf.mxu0
  %v57 = vadd.f32 %v34, %v56
  %58 = vdwg.mxu0
  %59 = vst [vmem:[%s3] sm:$0xff] %v54
  %60 = vst [vmem:[%s3 + $0x8] sm:$0xff] %v57
  // Predicated region
  $region14: #{decoder_forward.9} parent=0 // pred_check
    _
  $region15: #{decoder_forward.9} parent=0 // pred_check_branch
    %62 = sbr.rel (0) target = $region17
  $region16: #{decoder_forward.9} parent=0 // pred_region
    _
  $region17: #{decoder_forward.9} parent=0 // pred_fallthru
    _
  // Predicated region
  $region18: #{decoder_forward.9} parent=0 // pred_check
    _
  $region19: #{decoder_forward.9} parent=0 // pred_check_branch
    %64 = sbr.rel (0) target = $region21
  $region20: #{decoder_forward.9} parent=0 // pred_region
    _
  $region21: #{decoder_forward.9} parent=0 // pred_fallthru
    _

// kernel: decoder_forward.6
$region0: #{decoder_forward.6}
  #allocation0 [shape = 'u32[]', space=smem, size = 0x4, offset = 0x4, fixed_abs, tag = 'smem constant byte address 0x4 - core index']
  #allocation1 [shape = 'u32[72,128]{1,0:T(1,128)}', space=vmem, size = 0x9000, scoped, tag = 'internal scratch']
  #allocation2 [shape = 'f32[2,128]{1,0:T(2,128)}', space=vmem, size = 0x400, scoped, tag = 'scratch operand']
  %s0 = inlined_call_operand.vmem [shape: f32[8,2,384], index: 0, kind: input, shape index: {}]
  %s1 = inlined_call_operand.vmem [shape: f32[2,128], index: 1, kind: input, shape index: {}]
  %s2 = inlined_call_operand.hbm [shape: f32[128,384], index: 2, kind: input, shape index: {}]
  %s3 = inlined_call_operand.vmem [shape: f32[1,128], index: 3, kind: input, shape index: {}]
  %s4 = inlined_call_operand.vmem [shape: f32[8,2,128], index: 4, kind: output, shape index: {}]
  %s5 = sld [smem:[#allocation0]]
  $region41: #{decoder_forward.6} parent=0
    _
  %s7 = ssub.s32 1, %s5
  %s8 = scalar_select 0, %s7, %s5
  $region1: #{decoder_forward.6} parent=0
    #allocation3 [shape = 'u8[196608]{0}', space=vmem, size = 0x30000, scoped, tag = 'input window, operand 2, single buffered']
    #allocation4 [shape = 's32[1]{0}', space=sflag, size = 0x4, scoped, tag = 'scoped memory for decoder_forward.6']
    %9 = vsyncpa [#allocation4], 0
    // Predicated region
    $region2: #{decoder_forward.6} parent=1 // pred_check
      _
    $region3: #{decoder_forward.6} parent=1 // pred_check_branch
      %11 = sbr.rel (0) target = $region5
    $region4: #{decoder_forward.6} parent=1 // pred_region
      _
    $region5: #{decoder_forward.6} parent=1 // pred_fallthru
      _
    // Predicated region
    $region6: #{decoder_forward.6} parent=1 // pred_check
      _
    $region7: #{decoder_forward.6} parent=1 // pred_check_branch
      %13 = sbr.rel (0) target = $region9
    $region8: #{decoder_forward.6} parent=1 // pred_region
      _
    $region9: #{decoder_forward.6} parent=1 // pred_fallthru
      _
    // Predicated region
    $region10: #{decoder_forward.6} parent=1 // pred_check
      _
    $region11: #{decoder_forward.6} parent=1 // pred_check_branch
      %15 = sbr.rel (0) target = $region13
    $region12: #{decoder_forward.6} parent=1 // pred_region
      %17 = vsyncadd [#allocation4], 0
      %s18 = sshll.u32 %s2, 4
      %s19 = int_to_ptr.hbm [resolvable:$true] %s18
      %s20 = sshll.u32 [#allocation3], 4
      %s21 = int_to_ptr.vmem [resolvable:$true] %s20
      %26 = dma.hbm_to_vmem [thread:$0]  %s19, 6144, %s21, [#allocation4], 384, 384, 24
    $region13: #{decoder_forward.6} parent=1 // pred_fallthru
      _
    // Predicated region
    $region14: #{decoder_forward.6} parent=1 // pred_check
      _
    $region15: #{decoder_forward.6} parent=1 // pred_check_branch
      %28 = sbr.rel (0) target = $region17
    $region16: #{decoder_forward.6} parent=1 // pred_region
      _
    $region17: #{decoder_forward.6} parent=1 // pred_fallthru
      _
    // Predicated region
    $region18: #{decoder_forward.6} parent=1 // pred_check
      _
    $region19: #{decoder_forward.6} parent=1 // pred_check_branch
      %30 = sbr.rel (0) target = $region21
    $region20: #{decoder_forward.6} parent=1 // pred_region
      %32 = dma.done [#allocation4], 6144
    $region21: #{decoder_forward.6} parent=1 // pred_fallthru
      _
    %p33 = scmp.eq.s32.totalorder 0, 0
    // Predicated region
    $region22: #{decoder_forward.6} parent=1 // pred_check
      %p34 = pneg %p33
    $region23: #{decoder_forward.6} parent=1 // pred_check_branch
      %36 = sbr.rel (%p34) target = $region25
    $region24: #{decoder_forward.6} parent=1 // pred_region
      %v37 = vld [vmem:[%s1] sm:$0x3]
      %38 = vst [vmem:[#allocation2] sm:$0x3] %v37
    $region25: #{decoder_forward.6} parent=1 // pred_fallthru
      _
    %v39 = vld [vmem:[#allocation2] sm:$0x3]
    loop: start=0, step=1, limit=8
    $region26: #{decoder_forward.6} parent=1 // loop_pre_header
      _
    $region27: #{decoder_forward.6} parent=1 // loop_header
      %s41 = sphi 0, %s45
      %p42 = scmp.ge.s32.totalorder %s41, 8
      %v46 = vphi %v39, %v215
    $region28: #{decoder_forward.6} parent=1 // loop_header_branch
      %44 = sbr.rel (%p42) target = $region32
    $region29: #{decoder_forward.6} parent=1 // loop_body
      %s47 = smul.u32 %s41, 3
      %s48 = smul.addr %s47, 2
      %s49 = scalar_lea.vmem %s0, %s48
      %v50 = vld [vmem:[%s49] sm:$0x3f]
      %v51 = vld [vmem:[#allocation3] sm:$0xff]
      %v52 = vld [vmem:[#allocation3 + $0x8] sm:$0xff]
      %v53 = vld [vmem:[#allocation3 + $0x10] sm:$0xff]
      %v54 = vld [vmem:[#allocation3 + $0x18] sm:$0xff]
      %v55 = vld [vmem:[#allocation3 + $0x20] sm:$0xff]
      %v56 = vld [vmem:[#allocation3 + $0x28] sm:$0xff]
      %v57 = vld [vmem:[#allocation3 + $0x30] sm:$0xff]
      %v58 = vld [vmem:[#allocation3 + $0x38] sm:$0xff]
      %v59 = vld [vmem:[#allocation3 + $0x40] sm:$0xff]
      %v60 = vld [vmem:[#allocation3 + $0x48] sm:$0xff]
      %v61 = vld [vmem:[#allocation3 + $0x50] sm:$0xff]
      %v62 = vld [vmem:[#allocation3 + $0x58] sm:$0xff]
      %v63 = vld [vmem:[#allocation3 + $0x60] sm:$0xff]
      %v64 = vld [vmem:[#allocation3 + $0x68] sm:$0xff]
      %v65 = vld [vmem:[#allocation3 + $0x70] sm:$0xff]
      %v66 = vld [vmem:[#allocation3 + $0x78] sm:$0xff]
      %v67 = vld [vmem:[#allocation3 + $0x80] sm:$0xff]
      %v68 = vld [vmem:[#allocation3 + $0x88] sm:$0xff]
      %v69 = vld [vmem:[#allocation3 + $0x90] sm:$0xff]
      %v70 = vld [vmem:[#allocation3 + $0x98] sm:$0xff]
      %v71 = vld [vmem:[#allocation3 + $0xa0] sm:$0xff]
      %v72 = vld [vmem:[#allocation3 + $0xa8] sm:$0xff]
      %v73 = vld [vmem:[#allocation3 + $0xb0] sm:$0xff]
      %v74 = vld [vmem:[#allocation3 + $0xb8] sm:$0xff]
      %v75 = vld [vmem:[#allocation3 + $0xc0] sm:$0xff]
      %v76 = vld [vmem:[#allocation3 + $0xc8] sm:$0xff]
      %v77 = vld [vmem:[#allocation3 + $0xd0] sm:$0xff]
      %v78 = vld [vmem:[#allocation3 + $0xd8] sm:$0xff]
      %v79 = vld [vmem:[#allocation3 + $0xe0] sm:$0xff]
      %v80 = vld [vmem:[#allocation3 + $0xe8] sm:$0xff]
      %v81 = vld [vmem:[#allocation3 + $0xf0] sm:$0xff]
      %v82 = vld [vmem:[#allocation3 + $0xf8] sm:$0xff]
      %v83 = vld [vmem:[#allocation3 + $0x100] sm:$0xff]
      %v84 = vld [vmem:[#allocation3 + $0x108] sm:$0xff]
      %v85 = vld [vmem:[#allocation3 + $0x110] sm:$0xff]
      %v86 = vld [vmem:[#allocation3 + $0x118] sm:$0xff]
      %v87 = vld [vmem:[#allocation3 + $0x120] sm:$0xff]
      %v88 = vld [vmem:[#allocation3 + $0x128] sm:$0xff]
      %v89 = vld [vmem:[#allocation3 + $0x130] sm:$0xff]
      %v90 = vld [vmem:[#allocation3 + $0x138] sm:$0xff]
      %v91 = vld [vmem:[#allocation3 + $0x140] sm:$0xff]
      %v92 = vld [vmem:[#allocation3 + $0x148] sm:$0xff]
      %v93 = vld [vmem:[#allocation3 + $0x150] sm:$0xff]
      %v94 = vld [vmem:[#allocation3 + $0x158] sm:$0xff]
      %v95 = vld [vmem:[#allocation3 + $0x160] sm:$0xff]
      %v96 = vld [vmem:[#allocation3 + $0x168] sm:$0xff]
      %v97 = vld [vmem:[#allocation3 + $0x170] sm:$0xff]
      %v98 = vld [vmem:[#allocation3 + $0x178] sm:$0xff]
      %99 = vmatpush.msra.mxu0 %v96
      %100 = vmatpush.msra.mxu0 %v93
      %101 = vmatpush.msra.mxu0 %v90
      %102 = vmatpush.msra.mxu0 %v87
      %103 = vmatpush.msra.mxu0 %v84
      %104 = vmatpush.msra.mxu0 %v81
      %105 = vmatpush.msra.mxu0 %v78
      %106 = vmatpush.msra.mxu0 %v75
      %107 = vmatpush.msra.mxu0 %v72
      %108 = vmatpush.msra.mxu0 %v69
      %109 = vmatpush.msra.mxu0 %v66
      %110 = vmatpush.msra.mxu0 %v63
      %111 = vmatpush.msra.mxu0 %v60
      %112 = vmatpush.msra.mxu0 %v57
      %113 = vmatpush.msra.mxu0 %v54
      %114 = vmatpush.msra.mxu0 %v51
      %115 = vmatmul.f32.gmra.mxu0 %v46
      %v116 = vpop.f32.mrf.mxu0
      %v117 = vadd.f32 0.0, %v116
      %118 = vdwg.mxu0
      %119 = vmatpush.msra.mxu0 %v97
      %120 = vmatpush.msra.mxu0 %v94
      %121 = vmatpush.msra.mxu0 %v91
      %122 = vmatpush.msra.mxu0 %v88
      %123 = vmatpush.msra.mxu0 %v85
      %124 = vmatpush.msra.mxu0 %v82
      %125 = vmatpush.msra.mxu0 %v79
      %126 = vmatpush.msra.mxu0 %v76
      %127 = vmatpush.msra.mxu0 %v73
      %128 = vmatpush.msra.mxu0 %v70
      %129 = vmatpush.msra.mxu0 %v67
      %130 = vmatpush.msra.mxu0 %v64
      %131 = vmatpush.msra.mxu0 %v61
      %132 = vmatpush.msra.mxu0 %v58
      %133 = vmatpush.msra.mxu0 %v55
      %134 = vmatpush.msra.mxu0 %v52
      %135 = vmatmul.f32.gmra.mxu0 %v46
      %v136 = vpop.f32.mrf.mxu0
      %v137 = vadd.f32 0.0, %v136
      %138 = vdwg.mxu0
      %139 = vmatpush.msra.mxu0 %v98
      %140 = vmatpush.msra.mxu0 %v95
      %141 = vmatpush.msra.mxu0 %v92
      %142 = vmatpush.msra.mxu0 %v89
      %143 = vmatpush.msra.mxu0 %v86
      %144 = vmatpush.msra.mxu0 %v83
      %145 = vmatpush.msra.mxu0 %v80
      %146 = vmatpush.msra.mxu0 %v77
      %147 = vmatpush.msra.mxu0 %v74
      %148 = vmatpush.msra.mxu0 %v71
      %149 = vmatpush.msra.mxu0 %v68
      %150 = vmatpush.msra.mxu0 %v65
      %151 = vmatpush.msra.mxu0 %v62
      %152 = vmatpush.msra.mxu0 %v59
      %153 = vmatpush.msra.mxu0 %v56
      %154 = vmatpush.msra.mxu0 %v53
      %155 = vmatmul.f32.gmra.mxu0 %v46
      %v156 = vpop.f32.mrf.mxu0
      %v157 = vadd.f32 0.0, %v156
      %158 = vdwg.mxu0
      %v159 = vadd.f32 %v50, %v117
      %v160 = vxor.u32 %v159, 2147483648
      %v161 = vmul.f32 %v160, 1.442695
      %v162 = vpow.pop %v161
      %v163 = vadd.f32 %v162, 1.0
      %v164 = vrcp.pop %v163
      %v165 = vmul.f32 %v163, %v164
      %v166 = vsub.f32 1.0, %v165
      %v167 = vmul.f32 %v164, %v166
      %v168 = vadd.f32 %v164, %v167
      %vm169 = vweird.f32 %v163
      %vm170 = vweird.f32 %v164
      %vm171 = vmor %vm169, %vm170
      %v172 = vsel %vm171, %v164, %v168
      %v173 = vand.u32 2147483647, %v163
      %vm174 = vcmp.eq.f32.partialorder %v173, 8.507059e+37
      %v175 = vand.u32 %v163, 2147483648
      %v176 = vor.u32 1.1754944e-38, %v175
      %v177 = vsel %vm174, %v176, %v172
      %v178 = vmul.f32 1.0, %v177
      %v180 = vrot.slane %v50, 2
      %v182 = vadd.f32 %v180, %v137
      %v183 = vxor.u32 %v182, 2147483648
      %v184 = vmul.f32 %v183, 1.442695
      %v185 = vpow.pop %v184
      %v186 = vadd.f32 %v185, 1.0
      %v187 = vrcp.pop %v186
      %v188 = vmul.f32 %v186, %v187
      %v189 = vsub.f32 1.0, %v188
      %v190 = vmul.f32 %v187, %v189
      %v191 = vadd.f32 %v187, %v190
      %vm192 = vweird.f32 %v186
      %vm193 = vweird.f32 %v187
      %vm194 = vmor %vm192, %vm193
      %v195 = vsel %vm194, %v187, %v191
      %v196 = vand.u32 2147483647, %v186
      %vm197 = vcmp.eq.f32.partialorder %v196, 8.507059e+37
      %v198 = vand.u32 %v186, 2147483648
      %v199 = vor.u32 1.1754944e-38, %v198
      %v200 = vsel %vm197, %v199, %v195
      %v201 = vmul.f32 1.0, %v200
      %v202 = vld [vmem:[%s3] sm:$0x1]
      %v204 = vperm.slane %v202, 0
      %v206 = vadd.f32 %v157, %v204
      %v207 = vmul.f32 %v178, %v206
      %v208 = vrot.slane %v50, 4
      %v210 = vadd.f32 %v208, %v207
      %v211 = vtanh.pop %v210
      %v212 = vsub.f32 1.0, %v201
      %v213 = vmul.f32 %v212, %v211
      %v214 = vmul.f32 %v201, %v46
      %v215 = vadd.f32 %v213, %v214
      %s216 = smul.u32 %s41, 2
      %s217 = scalar_lea.vmem %s4, %s216
      %218 = vst [vmem:[%s217] sm:$0x3] %v215
    $region30: #{decoder_forward.6} parent=1 // loop_footer
      %s45 = sadd.s32 1, %s41
    $region31: #{decoder_forward.6} parent=1 // loop_footer_branch
      %40 = sbr.rel target = $region27
    $region32: #{decoder_forward.6} parent=1 // loop_exit
      _
    %219 = vst [vmem:[#allocation2] sm:$0x3] %v46
    // Predicated region
    $region33: #{decoder_forward.6} parent=1 // pred_check
      _
    $region34: #{decoder_forward.6} parent=1 // pred_check_branch
      %221 = sbr.rel (0) target = $region36
    $region35: #{decoder_forward.6} parent=1 // pred_region
      _
    $region36: #{decoder_forward.6} parent=1 // pred_fallthru
      _
    // Predicated region
    $region37: #{decoder_forward.6} parent=1 // pred_check
      _
    $region38: #{decoder_forward.6} parent=1 // pred_check_branch
      %223 = sbr.rel (0) target = $region40
    $region39: #{decoder_forward.6} parent=1 // pred_region
      _
    $region40: #{decoder_forward.6} parent=1 // pred_fallthru
      _
    %224 = vsyncpa [#allocation4], 1

</llo_original>
